<compile_context>
chip_gen: v7x
topology: tpu7x:2x2x1
jax: 0.10.0
libtpu: 0.0.40
codegen_flags: <defaults>
</compile_context>

<pallas_src>
import functools

import jax
import jax.numpy as jnp
from jax.experimental import pallas as pl
from jax.experimental.pallas import tpu as pltpu

_LANE = 128
_MAX_TILE_ROWS = 2048   # (2048, 128) f32 tile = 1 MiB; in+out double-buffered = 4 MiB VMEM.


def _burgers_kernel(d_ref, lh_ref, rh_ref, u_ref, out_ref, *, dx):
    """dU/dt of the 1-D Burgers PDE on one dense (T, 128) row-tile.

    d_ref  : SMEM (1,)        f32   d = sigmoid(d_org) * 0.01
    lh_ref : SMEM (n_tiles,)  f32   left neighbour of this tile's first element
    rh_ref : SMEM (n_tiles,)  f32   right neighbour of this tile's last element
    u_ref  : VMEM (T, 128)    f32   state, row-major folding of the spatial axis
    out_ref: VMEM (T, 128)    f32   time derivative
    """
    i = pl.program_id(0)
    d = d_ref[0]
    lh = lh_ref[i]
    rh = rh_ref[i]

    u = u_ref[...]                    # (T, 128), dense lane/sublane packing
    t, l = u.shape
    inv_dx = 1.0 / dx
    inv_dx2 = inv_dx * inv_dx

    lh_col = jnp.full((1, 1), lh, dtype=jnp.float32)
    rh_col = jnp.full((1, 1), rh, dtype=jnp.float32)

    # u_left[n] = u[n-1] in the flattened row-major ordering:
    #   lane > 0  -> same row, previous lane   (lane shift by +1)
    #   lane == 0 -> previous row, lane 127    (sublane shift); lh for row 0
    last_col = u[:, l - 1:l]                                  # (T, 1)
    if t > 1:
        left_edge = jnp.concatenate([lh_col, last_col[:t - 1, :]], axis=0)
    else:
        left_edge = lh_col
    u_left = jnp.concatenate([left_edge, u[:, :l - 1]], axis=1)

    # u_right[n] = u[n+1]:
    #   lane < 127  -> same row, next lane     (lane shift by -1)
    #   lane == 127 -> next row, lane 0        (sublane shift); rh for row T-1
    first_col = u[:, 0:1]                                     # (T, 1)
    if t > 1:
        right_edge = jnp.concatenate([first_col[1:, :], rh_col], axis=0)
    else:
        right_edge = rh_col
    u_right = jnp.concatenate([u[:, 1:], right_edge], axis=1)

    # conv1d stencils: laplacian [1,-2,1]/dx^2, adv_left [-1,1,0]/dx, adv_right [0,-1,1]/dx
    delta_u = (u_left - 2.0 * u + u_right) * inv_dx2
    adv_left = (u - u_left) * inv_dx
    adv_right = (u_right - u) * inv_dx
    adv = jnp.maximum(u, 0.0) * adv_left + jnp.minimum(u, 0.0) * adv_right

    out_ref[...] = d * delta_u - adv


def burgers_param_pde_forward(state, bc, d_org, dx, *, max_tile_rows=_MAX_TILE_ROWS):
    """JAX/Pallas equivalent of BurgersParamPDE.forward.

    state : (B, C, N) with B == C == 1 (the module's conv weights are (1, 1, 3))
    bc    : (1, C, 2); bc[..., 0] = left boundary value, bc[..., 1] = right
    d_org : scalar raw parameter (d = sigmoid(d_org) * 0.01)
    dx    : python float grid spacing
    """
    B, C, N = state.shape
    # TODO(synk): per-channel bc + sublane-packed (R, rows, 128) layout for B*C > 1;
    # the reference module itself only supports B == C == 1 (conv weight (1,1,3),
    # bc[:1] concat), so only that case is implemented.
    assert B == 1 and C == 1, "BurgersParamPDE assumes B == C == 1"

    bc_left = bc[0, 0, 0].astype(jnp.float32)
    bc_right = bc[0, 0, 1].astype(jnp.float32)
    d = jax.nn.sigmoid(jnp.asarray(d_org, jnp.float32)) * 0.01

    u_flat = state.reshape(N).astype(jnp.float32)

    # Fold the spatial axis row-major into a dense (rows, 128) layout and pick a
    # row-tile T: whole array for small problems, else _MAX_TILE_ROWS (mult. of 8).
    rows = pl.cdiv(N, _LANE)
    t = rows if rows <= max_tile_rows else max_tile_rows
    n_tiles = pl.cdiv(rows, t)
    rows_p = n_tiles * t
    np_ = rows_p * _LANE

    if np_ > N:
        # First pad element := bc_right so the right-neighbour read of the true
        # last element (index N-1) picks up the boundary value with no in-kernel
        # special casing.  (No pad at all when N is already tile-aligned.)
        pad = jnp.concatenate(
            [jnp.reshape(bc_right, (1,)), jnp.zeros((np_ - N - 1,), jnp.float32)])
        u_flat = jnp.concatenate([u_flat, pad])
    u_folded = u_flat.reshape(rows_p, _LANE)

    # Per-tile halo scalars: left neighbour of the tile's first element and right
    # neighbour of its last element; bc values fill the global boundaries.
    if n_tiles > 1:
        starts = jnp.arange(1, n_tiles, dtype=jnp.int32) * (t * _LANE)
        lh = jnp.concatenate([jnp.reshape(bc_left, (1,)), u_flat[starts - 1]])
        rh = jnp.concatenate([u_flat[starts], jnp.reshape(bc_right, (1,))])
    else:
        lh = jnp.reshape(bc_left, (1,))
        rh = jnp.reshape(bc_right, (1,))

    kernel = functools.partial(_burgers_kernel, dx=float(dx))

    out = pl.pallas_call(
        kernel,
        out_shape=jax.ShapeDtypeStruct((rows_p, _LANE), jnp.float32),
        grid=(n_tiles,),
        in_specs=[
            pl.BlockSpec(memory_space=pltpu.MemorySpace.SMEM),      # d
            pl.BlockSpec(memory_space=pltpu.MemorySpace.SMEM),      # left halos
            pl.BlockSpec(memory_space=pltpu.MemorySpace.SMEM),      # right halos
            pl.BlockSpec((t, _LANE), lambda i: (i, 0)),             # state tile
        ],
        out_specs=pl.BlockSpec((t, _LANE), lambda i: (i, 0)),
        compiler_params=pltpu.CompilerParams(
            dimension_semantics=("parallel",),     # independent tiles -> 2 TCs on v7x
            vmem_limit_bytes=32 * 1024 * 1024,     # safe within v7x's 64 MiB physical VMEM
        ),
        cost_estimate=pl.CostEstimate(
            flops=14 * rows_p * _LANE,
            transcendentals=0,
            bytes_accessed=4 * 2 * rows_p * _LANE,
        ),
    )(jnp.reshape(d, (1,)), lh, rh, u_folded)

    out_flat = out.reshape(rows_p * _LANE)
    if np_ > N:
        out_flat = out_flat[:N]
    return out_flat.reshape(B, C, N)


def _reference_forward(state, bc, d_org, dx):
    """Pure-jnp reference reproducing the PyTorch semantics."""
    u = state.astype(jnp.float32)
    d = jax.nn.sigmoid(jnp.asarray(d_org, jnp.float32)) * 0.01
    U_ = jnp.concatenate([bc[:1, :, :1], u, bc[:1, :, 1:]], axis=2)
    u_l, u_c, u_r = U_[:, :, :-2], U_[:, :, 1:-1], U_[:, :, 2:]
    delta_u = (u_l - 2.0 * u_c + u_r) / (dx * dx)
    adv_left = (u_c - u_l) / dx
    adv_right = (u_r - u_c) / dx
    adv = jnp.maximum(u, 0.0) * adv_left + jnp.minimum(u, 0.0) * adv_right
    return d * delta_u - adv


def _check(out, ref):
    err = jnp.max(jnp.abs(out - ref))
    tol = 1e-5 * (1.0 + jnp.max(jnp.abs(ref)))
    assert err <= tol, f"mismatch vs reference: {err} > {tol}"


if __name__ == "__main__":
    # Shapes consistent with the module: batch=1, channels=1, spatial N=16.
    B, C, N = 1, 1, 16
    dx = 1.0 / N

    key = jax.random.PRNGKey(0)
    k_u, k_bc, k_u2 = jax.random.split(key, 3)
    state = jax.random.normal(k_u, (B, C, N), dtype=jnp.float32)
    bc = jax.random.normal(k_bc, (1, C, 2), dtype=jnp.float32)
    d_org = jnp.float32(-2.0)    # same parameter init as the module

    out = jax.block_until_ready(burgers_param_pde_forward(state, bc, d_org, dx))
    assert out.shape == (B, C, N)
    _check(out, _reference_forward(state, bc, d_org, dx))

    # Multi-tile path: sublane row-crossings, per-tile halo scalars, ragged tail pad.
    N2 = 2000
    dx2 = 1.0 / N2
    state2 = jax.random.normal(k_u2, (1, 1, N2), dtype=jnp.float32)
    out2 = jax.block_until_ready(
        burgers_param_pde_forward(state2, bc, d_org, dx2, max_tile_rows=8))
    assert out2.shape == (1, 1, N2)
    _check(out2, _reference_forward(state2, bc, d_org, dx2))

    print("KERNEL_OK")
</pallas_src>

<mosaic_0001>
module attributes {stable_mosaic.version = 11 : i64} {
  func.func @_burgers_kernel(%arg0: i32, %arg1: memref<1xf32, #tpu.memory_space<smem>>, %arg2: memref<1xf32, #tpu.memory_space<smem>>, %arg3: memref<1xf32, #tpu.memory_space<smem>>, %arg4: memref<1x128xf32, #tpu.memory_space<vmem>>, %arg5: memref<1x128xf32, #tpu.memory_space<vmem>>) attributes {dimension_semantics = [#tpu.dimension_semantics<parallel>], iteration_bounds = array<i64: 1>, scalar_prefetch = 0 : i64, scratch_operands = 0 : i64, tpu.core_type = #tpu.core_type<tc>, window_params = [{transform_indices = @transform_0, window_bounds = array<i64: 1>}, {transform_indices = @transform_1, window_bounds = array<i64: 1>}, {transform_indices = @transform_2, window_bounds = array<i64: 1>}, {transform_indices = @transform_3, window_bounds = array<i64: 1, 128>}, {transform_indices = @transform_4, window_bounds = array<i64: 1, 128>}]} {
    %c0 = arith.constant 0 : index
    %0 = memref.load %arg1[%c0] : memref<1xf32, #tpu.memory_space<smem>>
    %1 = arith.index_cast %arg0 : i32 to index
    %2 = memref.load %arg2[%1] : memref<1xf32, #tpu.memory_space<smem>>
    %3 = arith.index_cast %arg0 : i32 to index
    %4 = memref.load %arg3[%3] : memref<1xf32, #tpu.memory_space<smem>>
    %c0_0 = arith.constant 0 : index
    %c0_1 = arith.constant 0 : index
    %5 = vector.load %arg4[%c0_0, %c0_1] : memref<1x128xf32, #tpu.memory_space<vmem>>, vector<1x128xf32>
    %6 = vector.broadcast %2 : f32 to vector<1x1xf32>
    %7 = vector.broadcast %4 : f32 to vector<1x1xf32>
    %8 = vector.extract_strided_slice %5 {offsets = [0, 0], sizes = [1, 127], strides = [1, 1]} : vector<1x128xf32> to vector<1x127xf32>
    %9 = tpu.concatenate %6, %8 in 1 : vector<1x1xf32>, vector<1x127xf32> -> vector<1x128xf32>
    %10 = vector.extract_strided_slice %5 {offsets = [0, 1], sizes = [1, 127], strides = [1, 1]} : vector<1x128xf32> to vector<1x127xf32>
    %11 = tpu.concatenate %10, %7 in 1 : vector<1x127xf32>, vector<1x1xf32> -> vector<1x128xf32>
    %cst = arith.constant 2.000000e+00 : f32
    %12 = vector.broadcast %cst : f32 to vector<1x128xf32>
    %13 = arith.mulf %12, %5 : vector<1x128xf32>
    %14 = arith.subf %9, %13 : vector<1x128xf32>
    %15 = arith.addf %14, %11 : vector<1x128xf32>
    %cst_2 = arith.constant 2.560000e+02 : f32
    %16 = vector.broadcast %cst_2 : f32 to vector<1x128xf32>
    %17 = arith.mulf %15, %16 : vector<1x128xf32>
    %18 = arith.subf %5, %9 : vector<1x128xf32>
    %cst_3 = arith.constant 1.600000e+01 : f32
    %19 = vector.broadcast %cst_3 : f32 to vector<1x128xf32>
    %20 = arith.mulf %18, %19 : vector<1x128xf32>
    %21 = arith.subf %11, %5 : vector<1x128xf32>
    %cst_4 = arith.constant 1.600000e+01 : f32
    %22 = vector.broadcast %cst_4 : f32 to vector<1x128xf32>
    %23 = arith.mulf %21, %22 : vector<1x128xf32>
    %cst_5 = arith.constant 0.000000e+00 : f32
    %24 = vector.broadcast %cst_5 : f32 to vector<1x128xf32>
    %25 = arith.maximumf %5, %24 : vector<1x128xf32>
    %26 = arith.mulf %25, %20 : vector<1x128xf32>
    %cst_6 = arith.constant 0.000000e+00 : f32
    %27 = vector.broadcast %cst_6 : f32 to vector<1x128xf32>
    %28 = arith.minimumf %5, %27 : vector<1x128xf32>
    %29 = arith.mulf %28, %23 : vector<1x128xf32>
    %30 = arith.addf %26, %29 : vector<1x128xf32>
    %31 = vector.broadcast %0 : f32 to vector<1x128xf32>
    %32 = arith.mulf %31, %17 : vector<1x128xf32>
    %33 = arith.subf %32, %30 : vector<1x128xf32>
    %c0_7 = arith.constant 0 : index
    %c0_8 = arith.constant 0 : index
    %34 = vector.load %arg5[%c0_7, %c0_8] : memref<1x128xf32, #tpu.memory_space<vmem>>, vector<1x128xf32>
    tpu.vector_store %arg5[%c0_7, %c0_8], %33 {strides = array<i32>} : memref<1x128xf32, #tpu.memory_space<vmem>>, vector<1x128xf32>,
    return
  }
  func.func @transform_0(%arg0: i32) -> i32 {
    %c0_i32 = arith.constant 0 : i32
    %c0_i32_0 = arith.constant 0 : i32
    return %c0_i32 : i32
  }
  func.func @transform_1(%arg0: i32) -> i32 {
    %c0_i32 = arith.constant 0 : i32
    %c0_i32_0 = arith.constant 0 : i32
    return %c0_i32 : i32
  }
  func.func @transform_2(%arg0: i32) -> i32 {
    %c0_i32 = arith.constant 0 : i32
    %c0_i32_0 = arith.constant 0 : i32
    return %c0_i32 : i32
  }
  func.func @transform_3(%arg0: i32) -> (i32, i32) {
    %c0_i32 = arith.constant 0 : i32
    %c0_i32_0 = arith.constant 0 : i32
    return %arg0, %c0_i32 : i32, i32
  }
  func.func @transform_4(%arg0: i32) -> (i32, i32) {
    %c0_i32 = arith.constant 0 : i32
    %c0_i32_0 = arith.constant 0 : i32
    return %arg0, %c0_i32 : i32, i32
  }
}

</mosaic_0001>

<llo_original>
// kernel: tpu_custom_call.1
$region0: #{tpu_custom_call.1}
  #allocation0 [shape = 'u32[]', space=smem, size = 0x4, offset = 0x4, fixed_abs, tag = 'smem constant byte address 0x4 - core index']
  #allocation1 [shape = 'u32[144,128]{1,0:T(1,128)}', space=vmem, size = 0x12000, scoped, tag = 'internal scratch']
  #allocation2 [shape = 'f32[1]{0:T(128)S(6)}', space=smem, size = 0x200, scoped, tag = 'scoped memory for tpu_custom_call.1']
  #allocation3 [shape = 'f32[1]{0:T(128)S(6)}', space=smem, size = 0x200, scoped, tag = 'scoped memory for tpu_custom_call.1']
  #allocation4 [shape = 'f32[1]{0:T(128)S(6)}', space=smem, size = 0x200, scoped, tag = 'scoped memory for tpu_custom_call.1']
  %s0 = inlined_call_operand.<no memory space> [shape: f32[1], index: 0, kind: input, shape index: {}]
  %s1 = inlined_call_operand.<no memory space> [shape: f32[1], index: 1, kind: input, shape index: {}]
  %s2 = inlined_call_operand.<no memory space> [shape: f32[1], index: 2, kind: input, shape index: {}]
  %s3 = inlined_call_operand.vmem [shape: f32[1,128], index: 3, kind: input, shape index: {}]
  %s4 = inlined_call_operand.hbm [shape: f32[1,128], index: 4, kind: output, shape index: {}]
  %s5 = sld [smem:[#allocation0]]
  $region26: #{tpu_custom_call.1} parent=0
    _
  %s7 = ssub.s32 1, %s5
  %s8 = scalar_select 0, %s7, %s5
  %9 = sst [smem:[#allocation2]] %s0
  %10 = sst [smem:[#allocation3]] %s1
  %11 = sst [smem:[#allocation4]] %s2
  $region1: #{tpu_custom_call.1} parent=0
    #allocation5 [shape = 'u8[512]{0}', space=vmem, size = 0x400, scoped, tag = 'output window, operand 0, single buffered']
    #allocation6 [shape = 's32[1]{0}', space=sflag, size = 0x4, scoped, tag = 'scoped memory for tpu_custom_call.1']
    %12 = vsyncpa [#allocation6], 0
    // Predicated region
    $region2: #{tpu_custom_call.1} parent=1 // pred_check
      _
    $region3: #{tpu_custom_call.1} parent=1 // pred_check_branch
      %14 = sbr.rel (0) target = $region5
    $region4: #{tpu_custom_call.1} parent=1 // pred_region
      _
    $region5: #{tpu_custom_call.1} parent=1 // pred_fallthru
      _
    // Predicated region
    $region6: #{tpu_custom_call.1} parent=1 // pred_check
      _
    $region7: #{tpu_custom_call.1} parent=1 // pred_check_branch
      %16 = sbr.rel (0) target = $region9
    $region8: #{tpu_custom_call.1} parent=1 // pred_region
      _
    $region9: #{tpu_custom_call.1} parent=1 // pred_fallthru
      _
    // Predicated region
    $region10: #{tpu_custom_call.1} parent=1 // pred_check
      _
    $region11: #{tpu_custom_call.1} parent=1 // pred_check_branch
      %18 = sbr.rel (0) target = $region13
    $region12: #{tpu_custom_call.1} parent=1 // pred_region
      _
    $region13: #{tpu_custom_call.1} parent=1 // pred_fallthru
      _
    // Predicated region
    $region14: #{tpu_custom_call.1} parent=1 // pred_check
      _
    $region15: #{tpu_custom_call.1} parent=1 // pred_check_branch
      %20 = sbr.rel (0) target = $region17
    $region16: #{tpu_custom_call.1} parent=1 // pred_region
      _
    $region17: #{tpu_custom_call.1} parent=1 // pred_fallthru
      _
    %s21 = sld [smem:[#allocation2]]
    %s22 = sld [smem:[#allocation3]]
    %s23 = sld [smem:[#allocation4]]
    %v24 = vld [vmem:[%s3] sm:$0x1]
    %v25 = vstv %s22
    %v26 = vstv %s23
    %v28 = vlaneseq
    %v29 = vshrl.u32 %v28, 7
    %v30 = vsub.s32 0, %v29
    %v31 = vrot.slane %v24, %v30
    %32 = vrot.lane.b32.xlu0 %v31, 1
    %v33 = vpop.permute.xlu0 %32
    %vm35 = vcmask 7168
    %v36 = vsel %vm35, %v25, %v33
    %37 = vrot.lane.b32.xlu0 %v31, 127
    %v38 = vpop.permute.xlu0 %37
    %vm40 = vcmask 1039360
    %v41 = vsel %vm40, %v38, %v26
    %v42 = vmul.f32 %v24, 2.0
    %v43 = vsub.f32 %v36, %v42
    %v44 = vadd.f32 %v43, %v41
    %v45 = vmul.f32 %v44, 256.0
    %v46 = vsub.f32 %v24, %v36
    %v47 = vmul.f32 %v46, 16.0
    %v48 = vsub.f32 %v41, %v24
    %v49 = vmul.f32 %v48, 16.0
    %v50 = vmax.f32 %v24, 0.0
    %v51 = vmul.f32 %v50, %v47
    %v52 = vmin.f32 %v24, 0.0
    %v53 = vmul.f32 %v52, %v49
    %v54 = vadd.f32 %v51, %v53
    %v55 = vstv %s21
    %v56 = vmul.f32 %v55, %v45
    %v57 = vsub.f32 %v56, %v54
    %58 = vst [vmem:[#allocation5] sm:$0x1] %v57
    // Predicated region
    $region18: #{tpu_custom_call.1} parent=1 // pred_check
      _
    $region19: #{tpu_custom_call.1} parent=1 // pred_check_branch
      %60 = sbr.rel (0) target = $region21
    $region20: #{tpu_custom_call.1} parent=1 // pred_region
      %s62 = ssub.s32 16, 16
      %63 = vsyncadd [#allocation6], %s62
      %s65 = sshll.u32 [#allocation5], 4
      %s66 = int_to_ptr.vmem [resolvable:$true] %s65
      %68 = dma.vmem_to_hbm [thread:$0]  %s66, 16, %s4, [#allocation6]
    $region21: #{tpu_custom_call.1} parent=1 // pred_fallthru
      _
    // Predicated region
    $region22: #{tpu_custom_call.1} parent=1 // pred_check
      _
    $region23: #{tpu_custom_call.1} parent=1 // pred_check_branch
      %70 = sbr.rel (0) target = $region25
    $region24: #{tpu_custom_call.1} parent=1 // pred_region
      %71 = dma.done [#allocation6], 16
    $region25: #{tpu_custom_call.1} parent=1 // pred_fallthru
      _
    %72 = vsyncpa [#allocation6], 1

</llo_original>
